<compile_context>
chip_gen: v7x
topology: tpu7x:2x2x1
jax: 0.10.0
libtpu: 0.0.40
codegen_flags: <defaults>
</compile_context>

<pallas_src>
import numpy as np
import jax
import jax.numpy as jnp
from jax.experimental import pallas as pl
from jax.experimental.pallas import tpu as pltpu


def _pad8(n):
    return ((n + 7) // 8) * 8


def pack_params(mean, std, w1, b1, w2, b2, logmat, dtype=jnp.float32):
    """One-time parameter fold + pack into a single sublane-aligned slab.

    Everything is stored already transposed / flatten-fused for the
    (feature, batch) kernel orientation:
      W1T   (H, D)  : (w1 / std)^T with the input normalization folded in
      b1T   (H, 1)  : b1 - (mean/std) @ w1
      W2f   (KK, H) : row i*K+j = w2[:, j]         (output layer + flatten fused)
      b2f   (KK, 1) : row i*K+j = b2[j]
      Mrep  (KK, K) : row i*K+j = exp(logmat[i, :] - rowmax_i)
      lmadj (KK, 1) : row i*K+j = logmat[i, j] - rowmax_i
    """
    D, H = w1.shape
    K = logmat.shape[0]
    KK = K * K

    mean = jnp.asarray(mean, jnp.float32).reshape(D)
    inv_std = 1.0 / jnp.asarray(std, jnp.float32).reshape(D)
    w1 = jnp.asarray(w1, jnp.float32)
    b1 = jnp.asarray(b1, jnp.float32).reshape(H)
    w2 = jnp.asarray(w2, jnp.float32)
    b2 = jnp.asarray(b2, jnp.float32).reshape(K)
    logmat = jnp.asarray(logmat, jnp.float32)

    W1T = (w1 * inv_std[:, None]).T                           # (H, D)
    b1T = (b1 - (mean * inv_std) @ w1).reshape(H, 1)          # (H, 1)

    W2f = jnp.tile(w2.T, (K, 1))                              # (KK, H)
    b2f = jnp.tile(b2.reshape(K, 1), (K, 1))                  # (KK, 1)

    rowmax = jnp.max(logmat, axis=1, keepdims=True)           # (K, 1)
    Mrep = jnp.repeat(jnp.exp(logmat - rowmax), K, axis=0)    # (KK, K)
    lmadj = (logmat - rowmax).reshape(KK, 1)                  # (KK, 1)

    blocks = [("w1", W1T), ("b1", b1T), ("w2", W2f), ("b2", b2f),
              ("me", Mrep), ("lm", lmadj)]
    C = max(int(a.shape[1]) for _, a in blocks)
    offs = {}
    parts = []
    r = 0
    for name, arr in blocks:
        nrows, ncols = arr.shape
        offs[name] = r                                        # all offsets multiple of 8
        pr = _pad8(nrows)
        blk = jnp.zeros((pr, C), dtype)
        blk = blk.at[:nrows, :ncols].set(arr.astype(dtype))
        parts.append(blk)
        r += pr
    params = jnp.concatenate(parts, axis=0)                   # (R, C): one resident DMA
    meta = dict(D=D, H=H, K=K, C=C, R=r, offs=offs)
    return params, meta


def _make_kernel(meta):
    D, H, K = meta["D"], meta["H"], meta["K"]
    KK = K * K
    o = meta["offs"]

    def kernel(xT_ref, p_ref, o_ref):
        xT = xT_ref[...]                                      # (D, TB): batch on lanes

        # Static, sublane-aligned slices of the packed parameter slab.
        W1T = p_ref[o["w1"]:o["w1"] + H, :D]
        b1T = p_ref[o["b1"]:o["b1"] + H, :1]
        W2f = p_ref[o["w2"]:o["w2"] + KK, :H]
        b2f = p_ref[o["b2"]:o["b2"] + KK, :1]
        Mrep = p_ref[o["me"]:o["me"] + KK, :K]
        lmadj = p_ref[o["lm"]:o["lm"] + KK, :1]

        # layer_1 (normalization folded) + relu, transposed: (H, TB)
        hT = jnp.maximum(
            jnp.dot(W1T, xT, preferred_element_type=jnp.float32) + b1T, 0.0)
        # output layer fused with the (i,j)->i*K+j flatten: ot[i*K+j, b] = out[b, j]
        ot = jnp.dot(W2f, hT, preferred_element_type=jnp.float32) + b2f      # (KK, TB)

        # lse[b,i] = rowmax_i + mo_b + log(sum_j exp(logmat[i,j]-rowmax_i)*exp(out[b,j]-mo_b))
        # Each out[b,j] is repeated K times along ot's rows, so a full-column max works.
        mo = jnp.max(ot, axis=0, keepdims=True)                              # (1, TB)
        e = jnp.exp(ot[:K, :] - mo)                                          # (K, TB)
        s = jnp.dot(Mrep, e, preferred_element_type=jnp.float32)             # (KK, TB)

        # res[i*K+j, b] = (logmat[i,j]-rowmax_i) + out[b,j] - mo_b - log(s[i*K+j,b])
        res = lmadj + ot - mo - jnp.log(s)                                   # (KK, TB)
        o_ref[...] = res.astype(o_ref.dtype)                                 # lane-dense store

    return kernel


def _choose_tile(B, tb_max):
    """Pick a lane-aligned batch tile. Prefers >= 2 balanced grid steps (v7x has
    2 TensorCores); falls back to a single full-width block, and only pads the
    (tiny, transposed) input when B is large and has no 128-aligned divisor."""
    cap = min(tb_max, B // 2) if B >= 256 else 0
    cap = (cap // 128) * 128
    for cand in range(cap, 0, -128):
        if B % cand == 0:
            return cand, B                     # no padding, >= 2 steps
    if B <= tb_max:
        return B, B                            # single block equal to full dim
    tb = (tb_max // 128) * 128
    return tb, pl.cdiv(B, tb) * tb             # rare fallback: pad transposed input


def bnrr_forward(xu, params, meta, *, tb_max=2048):
    """Eval-mode forward. Returns (B, K, K) row-log-normalized transition matrices."""
    B, D = xu.shape
    assert D == meta["D"]
    K = meta["K"]
    KK = K * K

    tb, b_pad = _choose_tile(B, tb_max)
    xT = xu.T                                  # one-time transpose: batch on lanes
    if b_pad != B:
        xT = jnp.pad(xT, ((0, 0), (0, b_pad - B)))   # pads only D rows' worth of data

    kernel = _make_kernel(meta)
    out_flat = pl.pallas_call(
        kernel,
        out_shape=jax.ShapeDtypeStruct((KK, b_pad), jnp.float32),
        grid=(b_pad // tb,),
        in_specs=[
            pl.BlockSpec((D, tb), lambda i: (0, i)),                   # batch-tiled input
            pl.BlockSpec((meta["R"], meta["C"]), lambda i: (0, 0)),    # resident constants
        ],
        out_specs=pl.BlockSpec((KK, tb), lambda i: (0, i)),            # lane-dense output
        compiler_params=pltpu.CompilerParams(
            dimension_semantics=("parallel",)),
        # Per-step VMEM footprint is < 1 MiB even at tb=2048, so the default
        # scoped-VMEM limit (16 MiB on v5e) is never the binding constraint.
    )(xT, params)

    return out_flat[:, :B].T.reshape(B, K, K)


if __name__ == "__main__":
    # sizes = (input_dim, hidden, n_states) as in the module's __init__
    D, H, K = 6, 32, 4
    B = 1024            # demo batch; tile chooser -> tb=512, grid of 2 steps

    key = jax.random.PRNGKey(0)
    ks = jax.random.split(key, 6)

    xu = jax.random.normal(ks[0], (B, D), jnp.float32)
    mean = 0.1 * jax.random.normal(ks[1], (1, D), jnp.float32)            # norm['mean']
    std = jnp.abs(jax.random.normal(ks[2], (1, D), jnp.float32)) + 0.5    # norm['std']

    w1 = 0.2 * jax.random.normal(ks[3], (D, H), jnp.float32)              # layer_1 mean weight
    b1 = 0.1 * jax.random.normal(ks[4], (1, H), jnp.float32)              # layer_1 mean bias
    w2 = 0.2 * jax.random.normal(ks[5], (H, K), jnp.float32)              # output mean weight
    b2 = jnp.zeros((1, K), jnp.float32)                                   # output mean bias

    # logmat init exactly as __init__: log of uniform row-stochastic matrix
    logmat = jnp.log(jnp.full((K, K), 1.0 / K, jnp.float32))

    # One-time parameter fold / packing (setup time, not per forward call).
    params, meta = pack_params(mean, std, w1, b1, w2, b2, logmat)

    out = bnrr_forward(xu, params, meta, tb_max=2048)
    out = jax.block_until_ready(out)

    # pure-JAX reference (original, un-folded math)
    x = (xu - mean) / std
    h = jnp.maximum(x @ w1 + b1, 0.0)
    o = h @ w2 + b2
    lt = logmat[None, :, :] + o[:, None, :]
    ref = lt - jax.nn.logsumexp(lt, axis=-1, keepdims=True)

    assert out.shape == (B, K, K)
    assert np.allclose(np.asarray(out), np.asarray(ref), atol=1e-4), "mismatch vs reference"

    print("KERNEL_OK")
</pallas_src>

<mosaic_0001>
module attributes {stable_mosaic.version = 11 : i64} {
  func.func @kernel(%arg0: i32, %arg1: memref<6x512xf32, #tpu.memory_space<vmem>>, %arg2: memref<128x32xf32, #tpu.memory_space<vmem>>, %arg3: memref<16x512xf32, #tpu.memory_space<vmem>>) attributes {dimension_semantics = [#tpu.dimension_semantics<parallel>], iteration_bounds = array<i64: 2>, scalar_prefetch = 0 : i64, scratch_operands = 0 : i64, tpu.core_type = #tpu.core_type<tc>, window_params = [{transform_indices = @transform_0, window_bounds = array<i64: 6, 512>}, {pipeline_mode = #tpu.pipeline_mode<synchronous>, transform_indices = @transform_1, window_bounds = array<i64: 128, 32>}, {transform_indices = @transform_2, window_bounds = array<i64: 16, 512>}]} {
    %c0 = arith.constant 0 : index
    %c0_0 = arith.constant 0 : index
    %0 = vector.load %arg1[%c0, %c0_0] : memref<6x512xf32, #tpu.memory_space<vmem>>, vector<6x512xf32>
    %c0_1 = arith.constant 0 : index
    %c0_2 = arith.constant 0 : index
    %1 = vector.load %arg2[%c0_1, %c0_2] : memref<128x32xf32, #tpu.memory_space<vmem>>, vector<32x6xf32>
    %c32 = arith.constant 32 : index
    %c0_3 = arith.constant 0 : index
    %2 = vector.load %arg2[%c32, %c0_3] : memref<128x32xf32, #tpu.memory_space<vmem>>, vector<32x1xf32>
    %c64 = arith.constant 64 : index
    %c0_4 = arith.constant 0 : index
    %3 = vector.load %arg2[%c64, %c0_4] : memref<128x32xf32, #tpu.memory_space<vmem>>, vector<16x32xf32>
    %c80 = arith.constant 80 : index
    %c0_5 = arith.constant 0 : index
    %4 = vector.load %arg2[%c80, %c0_5] : memref<128x32xf32, #tpu.memory_space<vmem>>, vector<16x1xf32>
    %c96 = arith.constant 96 : index
    %c0_6 = arith.constant 0 : index
    %5 = vector.load %arg2[%c96, %c0_6] : memref<128x32xf32, #tpu.memory_space<vmem>>, vector<16x4xf32>
    %c112 = arith.constant 112 : index
    %c0_7 = arith.constant 0 : index
    %6 = vector.load %arg2[%c112, %c0_7] : memref<128x32xf32, #tpu.memory_space<vmem>>, vector<16x1xf32>
    %cst = arith.constant dense<0.000000e+00> : vector<32x512xf32>
    %7 = tpu.matmul %1, %0, %cst {dimension_numbers = #tpu.dot_dimension_numbers<[1], [0], [0], [1], [0, 0, 1, 1], [], []>} : vector<32x6xf32>, vector<6x512xf32>, vector<32x512xf32> -> vector<32x512xf32>
    %8 = vector.broadcast %2 : vector<32x1xf32> to vector<32x512xf32>
    %9 = arith.addf %7, %8 : vector<32x512xf32>
    %cst_8 = arith.constant 0.000000e+00 : f32
    %10 = vector.broadcast %cst_8 : f32 to vector<32x512xf32>
    %11 = arith.maximumf %9, %10 : vector<32x512xf32>
    %cst_9 = arith.constant dense<0.000000e+00> : vector<16x512xf32>
    %12 = tpu.matmul %3, %11, %cst_9 {dimension_numbers = #tpu.dot_dimension_numbers<[1], [0], [0], [1], [0, 0, 1, 1], [], []>} : vector<16x32xf32>, vector<32x512xf32>, vector<16x512xf32> -> vector<16x512xf32>
    %13 = vector.broadcast %4 : vector<16x1xf32> to vector<16x512xf32>
    %14 = arith.addf %12, %13 : vector<16x512xf32>
    %cst_10 = arith.constant dense<0xFF800000> : vector<512xf32>
    %15 = vector.multi_reduction <maximumf>, %14, %cst_10 [0] : vector<16x512xf32> to vector<512xf32>
    %16 = vector.shape_cast %15 : vector<512xf32> to vector<1x512xf32>
    %17 = vector.extract_strided_slice %14 {offsets = [0, 0], sizes = [4, 512], strides = [1, 1]} : vector<16x512xf32> to vector<4x512xf32>
    %18 = vector.broadcast %16 : vector<1x512xf32> to vector<4x512xf32>
    %19 = arith.subf %17, %18 : vector<4x512xf32>
    %20 = math.exp %19 : vector<4x512xf32>
    %cst_11 = arith.constant dense<0.000000e+00> : vector<16x512xf32>
    %21 = tpu.matmul %5, %20, %cst_11 {dimension_numbers = #tpu.dot_dimension_numbers<[1], [0], [0], [1], [0, 0, 1, 1], [], []>} : vector<16x4xf32>, vector<4x512xf32>, vector<16x512xf32> -> vector<16x512xf32>
    %22 = vector.broadcast %6 : vector<16x1xf32> to vector<16x512xf32>
    %23 = arith.addf %22, %14 : vector<16x512xf32>
    %24 = vector.broadcast %16 : vector<1x512xf32> to vector<16x512xf32>
    %25 = arith.subf %23, %24 : vector<16x512xf32>
    %26 = math.log %21 : vector<16x512xf32>
    %27 = arith.subf %25, %26 : vector<16x512xf32>
    %c0_12 = arith.constant 0 : index
    %c0_13 = arith.constant 0 : index
    %28 = vector.load %arg3[%c0_12, %c0_13] : memref<16x512xf32, #tpu.memory_space<vmem>>, vector<16x512xf32>
    tpu.vector_store %arg3[%c0_12, %c0_13], %27 {strides = array<i32>} : memref<16x512xf32, #tpu.memory_space<vmem>>, vector<16x512xf32>,
    return
  }
  func.func @transform_0(%arg0: i32) -> (i32, i32) {
    %c0_i32 = arith.constant 0 : i32
    %c0_i32_0 = arith.constant 0 : i32
    return %c0_i32, %arg0 : i32, i32
  }
  func.func @transform_1(%arg0: i32) -> (i32, i32) {
    %c0_i32 = arith.constant 0 : i32
    %c0_i32_0 = arith.constant 0 : i32
    %c0_i32_1 = arith.constant 0 : i32
    return %c0_i32, %c0_i32_0 : i32, i32
  }
  func.func @transform_2(%arg0: i32) -> (i32, i32) {
    %c0_i32 = arith.constant 0 : i32
    %c0_i32_0 = arith.constant 0 : i32
    return %c0_i32, %arg0 : i32, i32
  }
}

</mosaic_0001>

<llo_original>
// kernel: tpu_custom_call.1
$region0: #{tpu_custom_call.1}
  #allocation0 [shape = 'u32[]', space=smem, size = 0x4, offset = 0x4, fixed_abs, tag = 'smem constant byte address 0x4 - core index']
  #allocation1 [shape = 'u32[144,128]{1,0:T(1,128)}', space=vmem, size = 0x12000, scoped, tag = 'internal scratch']
  %s0 = inlined_call_operand.vmem [shape: f32[6,1024], index: 0, kind: input, shape index: {}]
  %s1 = inlined_call_operand.vmem [shape: f32[128,32], index: 1, kind: input, shape index: {}]
  %s2 = inlined_call_operand.hbm [shape: f32[16,1024], index: 2, kind: output, shape index: {}]
  %s3 = sld [smem:[#allocation0]]
  $region41: #{tpu_custom_call.1} parent=0
    _
  %s5 = ssub.s32 1, %s3
  %s6 = scalar_select 0, %s5, %s3
  $region1: #{tpu_custom_call.1} parent=0
    #allocation2 [shape = 'u8[65536]{0}', space=vmem, size = 0x10000, scoped, tag = 'output window, operand 0']
    #allocation3 [shape = 's32[2]{0}', space=sflag, size = 0x8, scoped, tag = 'scoped memory for tpu_custom_call.1']
    %7 = vsyncpa [#allocation3], 0
    %s8 = scalar_lea.sflag [#allocation3], 1
    %9 = vsyncpa %s8, 0
    loop: start=0, step=1, limit=4
    $region2: #{tpu_custom_call.1} parent=1 // loop_pre_header
      _
    $region3: #{tpu_custom_call.1} parent=1 // loop_header
      %s11 = sphi 0, %s15
      %p12 = scmp.ge.s32.totalorder %s11, 4
      %s21 = sphi 0, %s23
      %s24 = sphi 0, %s21
      %s25 = sphi 0, %s24
      %s41 = sphi 0, %s25
      %s45 = sphi 0, %s45
      %s47 = sphi 0, %s45
      %s48 = sphi 0, %s47
      %s62 = sphi 0, %s48
      %s68 = sphi 0, %s70
      %s71 = sphi 0, %s68
      %s72 = sphi 0, %s71
      %s88 = sphi 0, %s72
    $region4: #{tpu_custom_call.1} parent=1 // loop_header_branch
      %14 = sbr.rel (%p12) target = $region8
    $region5: #{tpu_custom_call.1} parent=1 // loop_body
      %s16 = ssub.s32 %s11, 1
      %s17 = ssub.s32 %s11, 2
      %s18 = sadd.s32 %s11, 1
      %s19 = ssub.s32 %s11, %s18
      %p20 = scmp.eq.s32.totalorder %s19, 0
      %s22 = sadd.s32 %s21, 1
      %s23 = scalar_select %p20, %s21, %s22
      %p26 = pneg %p20
      %p27 = scmp.eq.s32.totalorder %s11, 1
      %p28 = por %p26, %p27
      %p29 = scmp.ne.s32.totalorder %s21, %s24
      %p30 = scmp.eq.s32.totalorder %s11, 0
      %p31 = por %p29, %p30
      %p32 = scmp.ne.s32.totalorder %s21, %s24
      %p33 = scmp.eq.s32.totalorder %s16, 1
      %p34 = por %p32, %p33
      %p35 = scmp.ne.s32.totalorder %s24, %s25
      %p36 = scmp.eq.s32.totalorder %s16, 0
      %p37 = por %p35, %p36
      %p38 = scmp.ne.s32.totalorder %s24, %s25
      %p39 = scmp.eq.s32.totalorder %s17, 1
      %p40 = por %p38, %p39
      %p42 = scmp.ne.s32.totalorder %s25, %s41
      %p43 = scmp.eq.s32.totalorder %s17, 0
      %p44 = por %p42, %p43
      %s46 = sadd.s32 %s45, 1
      %p49 = scmp.eq.s32.totalorder %s11, 1
      %p50 = scmp.ne.s32.totalorder %s45, %s47
      %p51 = scmp.eq.s32.totalorder %s11, 0
      %p52 = por %p50, %p51
      %p53 = scmp.ne.s32.totalorder %s45, %s47
      %p54 = scmp.eq.s32.totalorder %s16, 1
      %p55 = por %p53, %p54
      %p56 = scmp.ne.s32.totalorder %s47, %s48
      %p57 = scmp.eq.s32.totalorder %s16, 0
      %p58 = por %p56, %p57
      %p59 = scmp.ne.s32.totalorder %s47, %s48
      %p60 = scmp.eq.s32.totalorder %s17, 1
      %p61 = por %p59, %p60
      %p63 = scmp.ne.s32.totalorder %s48, %s62
      %p64 = scmp.eq.s32.totalorder %s17, 0
      %p65 = por %p63, %p64
      %s66 = ssub.s32 %s11, %s18
      %p67 = scmp.eq.s32.totalorder %s66, 0
      %s69 = sadd.s32 %s68, 1
      %s70 = scalar_select %p67, %s68, %s69
      %p73 = pneg %p67
      %p74 = scmp.eq.s32.totalorder %s11, 1
      %p75 = por %p73, %p74
      %p76 = scmp.ne.s32.totalorder %s68, %s71
      %p77 = scmp.eq.s32.totalorder %s11, 0
      %p78 = por %p76, %p77
      %p79 = scmp.ne.s32.totalorder %s68, %s71
      %p80 = scmp.eq.s32.totalorder %s16, 1
      %p81 = por %p79, %p80
      %p82 = scmp.ne.s32.totalorder %s71, %s72
      %p83 = scmp.eq.s32.totalorder %s16, 0
      %p84 = por %p82, %p83
      %p85 = scmp.ne.s32.totalorder %s71, %s72
      %p86 = scmp.eq.s32.totalorder %s17, 1
      %p87 = por %p85, %p86
      %p89 = scmp.ne.s32.totalorder %s72, %s88
      %p90 = scmp.eq.s32.totalorder %s17, 0
      %p91 = por %p89, %p90
      %p92 = scmp.le.s32.totalorder 1, %s11
      %p93 = scmp.lt.s32.totalorder %s11, 3
      %p94 = pnand %p92, %p93
      %p95 = pneg %p94
      // Predicated region
      $region9: #{tpu_custom_call.1} parent=5 // pred_check
        _
      $region10: #{tpu_custom_call.1} parent=5 // pred_check_branch
        %97 = sbr.rel (%p94) target = $region12
      $region11: #{tpu_custom_call.1} parent=5 // pred_region
        %s98 = ssub.s32 %s11, 1
        // Predicated region
        $region13: #{tpu_custom_call.1} parent=11 // pred_check
          %p99 = pneg %p58
        $region14: #{tpu_custom_call.1} parent=11 // pred_check_branch
          %101 = sbr.rel (%p99) target = $region16
        $region15: #{tpu_custom_call.1} parent=11 // pred_region
          _
        $region16: #{tpu_custom_call.1} parent=11 // pred_fallthru
          _
      $region12: #{tpu_custom_call.1} parent=5 // pred_fallthru
        _
      %p102 = scmp.lt.s32.totalorder %s11, 2
      // Predicated region
      $region17: #{tpu_custom_call.1} parent=5 // pred_check
        %p103 = pneg %p102
      $region18: #{tpu_custom_call.1} parent=5 // pred_check_branch
        %105 = sbr.rel (%p103) target = $region20
      $region19: #{tpu_custom_call.1} parent=5 // pred_region
        // Predicated region
        $region21: #{tpu_custom_call.1} parent=19 // pred_check
          %p106 = pneg %p31
        $region22: #{tpu_custom_call.1} parent=19 // pred_check_branch
          %108 = sbr.rel (%p106) target = $region24
        $region23: #{tpu_custom_call.1} parent=19 // pred_region
          %s109 = smul.u32 4, %s11
          %p110 = scmp.lt.s32.totalorder %s109, 7
          %s111 = scalar_select %p110, %s109, 7
          %s112 = smul.addr %s111, 8
          %s113 = scalar_lea.vmem %s0, %s112
          %s114 = smul.u32 4, %s11
        $region24: #{tpu_custom_call.1} parent=19 // pred_fallthru
          _
      $region20: #{tpu_custom_call.1} parent=5 // pred_fallthru
        _
      %p115 = scmp.le.s32.totalorder 1, %s11
      %p116 = scmp.lt.s32.totalorder %s11, 3
      %p117 = pnand %p115, %p116
      %p118 = pneg %p117
      // Predicated region
      $region25: #{tpu_custom_call.1} parent=5 // pred_check
        _
      $region26: #{tpu_custom_call.1} parent=5 // pred_check_branch
        %120 = sbr.rel (%p117) target = $region28
      $region27: #{tpu_custom_call.1} parent=5 // pred_region
        %s121 = ssub.s32 %s11, 1
        %s122 = smul.u32 4, %s16
        %p123 = scmp.lt.s32.totalorder %s122, 7
        %s124 = scalar_select %p123, %s122, 7
        %s125 = smul.addr %s124, 8
        %s126 = scalar_lea.vmem %s0, %s125
        %p127 = pneg %p37
        %p128 = pneg %p34
        %p129 = pneg %p58
        %p130 = pneg %p55
        %p131 = pneg %p84
        %p132 = pneg %p81
        %s133 = sand.u32 %s71, 1
        %s134 = scalar_lea.sflag [#allocation3], %s133
        %s135 = sand.u32 %s71, 1
        %s136 = smul.addr %s135, 64
        %s137 = scalar_lea.vmem [#allocation2], %s136
        %s138 = smul.u32 4, %s16
        %p139 = scmp.lt.s32.totalorder %s138, 7
        %s140 = scalar_select %p139, %s138, 7
        %s141 = smul.addr %s140, 8
        %s142 = scalar_lea.vmem %s0, %s141
        %s143 = smul.u32 4, %s16
        %s144 = smul.u32 4, %s16
        %v145 = vld [vmem:[%s142] sm:$0x3f]
        %v146 = vld [vmem:[%s142 + $0x8] sm:$0x3f]
        %v147 = vld [vmem:[%s142 + $0x10] sm:$0x3f]
        %v148 = vld [vmem:[%s142 + $0x18] sm:$0x3f]
        %v149 = vld [vmem:[%s1] sm:$0xff]
        %v150 = vld [vmem:[%s1 + $0x8] sm:$0xff]
        %v151 = vld [vmem:[%s1 + $0x10] sm:$0xff]
        %v152 = vld [vmem:[%s1 + $0x18] sm:$0xff]
        %v153 = vld [vmem:[%s1 + $0x20] sm:$0xff]
        %v154 = vld [vmem:[%s1 + $0x28] sm:$0xff]
        %v155 = vld [vmem:[%s1 + $0x30] sm:$0xff]
        %v156 = vld [vmem:[%s1 + $0x38] sm:$0xff]
        %v157 = vld [vmem:[%s1 + $0x40] sm:$0xff]
        %v158 = vld [vmem:[%s1 + $0x48] sm:$0xff]
        %v159 = vld [vmem:[%s1 + $0x50] sm:$0xff]
        %v160 = vld [vmem:[%s1 + $0x58] sm:$0xff]
        %v161 = vld [vmem:[%s1 + $0x60] sm:$0xff]
        %v162 = vld [vmem:[%s1 + $0x68] sm:$0xff]
        %v163 = vld [vmem:[%s1 + $0x70] sm:$0xff]
        %v164 = vld [vmem:[%s1 + $0x78] sm:$0xff]
        %166 = vset.pattern.permute.xlu0 0
        %167 = vperm.xlu0 %166, %v153
        %v168 = vpop.permute.xlu0 %167
        %171 = vset.pattern.permute.xlu0 0
        %172 = vperm.xlu0 %171, %v154
        %v173 = vpop.permute.xlu0 %172
        %176 = vset.pattern.permute.xlu0 0
        %177 = vperm.xlu0 %176, %v155
        %v178 = vpop.permute.xlu0 %177
        %181 = vset.pattern.permute.xlu0 0
        %182 = vperm.xlu0 %181, %v156
        %v183 = vpop.permute.xlu0 %182
        %vm185 = vcmask 48128
        %v187 = vsel %vm185, %v149, 0
        %v190 = vsel %vm185, %v150, 0
        %v193 = vsel %vm185, %v151, 0
        %v196 = vsel %vm185, %v152, 0
        %vm198 = vcmask 1045504
        %v200 = vsel %vm198, %v145, 0
        %v203 = vsel %vm198, %v146, 0
        %v206 = vsel %vm198, %v147, 0
        %v209 = vsel %vm198, %v148, 0
        %211 = vmatprep.subr.mxu0 %v203
        %212 = vmatpush1.msra.mxu0 %v200
        %213 = vmatprep.subr.mxu0 0.0
        %214 = vmatpush1.msra.mxu0 0.0
        %215 = vmatprep.subr.mxu0 0.0
        %216 = vmatpush1.msra.mxu0 0.0
        %217 = vmatprep.subr.mxu0 0.0
        %218 = vmatpush1.msra.mxu0 0.0
        %219 = vmatprep.subr.mxu0 0.0
        %220 = vmatpush1.msra.mxu0 0.0
        %221 = vmatprep.subr.mxu0 0.0
        %222 = vmatpush1.msra.mxu0 0.0
        %223 = vmatprep.subr.mxu0 0.0
        %224 = vmatpush1.msra.mxu0 0.0
        %225 = vmatprep.subr.mxu0 0.0
        %226 = vmatpush1.msra.mxu0 0.0
        %227 = vmatprep.subr.mxu0 0.0
        %228 = vmatpush1.msra.mxu0 0.0
        %229 = vmatprep.subr.mxu0 0.0
        %230 = vmatpush1.msra.mxu0 0.0
        %231 = vmatprep.subr.mxu0 0.0
        %232 = vmatpush1.msra.mxu0 0.0
        %233 = vmatprep.subr.mxu0 0.0
        %234 = vmatpush1.msra.mxu0 0.0
        %235 = vmatprep.subr.mxu0 0.0
        %236 = vmatpush1.msra.mxu0 0.0
        %237 = vmatprep.subr.mxu0 0.0
        %238 = vmatpush1.msra.mxu0 0.0
        %239 = vmatprep.subr.mxu0 0.0
        %240 = vmatpush1.msra.mxu0 0.0
        %241 = vmatprep.subr.mxu0 0.0
        %242 = vmatpush1.msra.mxu0 0.0
        %243 = vmatprep.subr.mxu0 0.0
        %244 = vmatpush1.msra.mxu0 0.0
        %245 = vmatprep.subr.mxu0 0.0
        %246 = vmatpush1.msra.mxu0 0.0
        %247 = vmatprep.subr.mxu0 0.0
        %248 = vmatpush1.msra.mxu0 0.0
        %249 = vmatprep.subr.mxu0 0.0
        %250 = vmatpush1.msra.mxu0 0.0
        %251 = vmatprep.subr.mxu0 0.0
        %252 = vmatpush1.msra.mxu0 0.0
        %253 = vmatprep.subr.mxu0 0.0
        %254 = vmatpush1.msra.mxu0 0.0
        %255 = vmatprep.subr.mxu0 0.0
        %256 = vmatpush1.msra.mxu0 0.0
        %257 = vmatprep.subr.mxu0 0.0
        %258 = vmatpush1.msra.mxu0 0.0
        %259 = vmatprep.subr.mxu0 0.0
        %260 = vmatpush1.msra.mxu0 0.0
        %261 = vmatprep.subr.mxu0 0.0
        %262 = vmatpush1.msra.mxu0 0.0
        %263 = vmatprep.subr.mxu0 0.0
        %264 = vmatpush1.msra.mxu0 0.0
        %265 = vmatprep.subr.mxu0 0.0
        %266 = vmatpush1.msra.mxu0 0.0
        %267 = vmatprep.subr.mxu0 0.0
        %268 = vmatpush1.msra.mxu0 0.0
        %269 = vmatprep.subr.mxu0 0.0
        %270 = vmatpush1.msra.mxu0 0.0
        %271 = vmatprep.subr.mxu0 0.0
        %272 = vmatpush1.msra.mxu0 0.0
        %273 = vmatprep.subr.mxu0 0.0
        %274 = vmatpush1.msra.mxu0 0.0
        %275 = vmatprep.mubr.f32.mxu0 0.0
        %276 = vmatmul.mubr.f32.gmra.mrb[0].mxu0 %v187
        %v277 = vpop.f32.mrb[0].mxu0
        %v278 = vadd.f32 %v168, %v277
        %v279 = vpop.f32.mrb[0].mxu0
        %v280 = vadd.f32 %v168, %v279
        %281 = vmatprep.mubr.f32.mxu0 0.0
        %282 = vmatmul.mubr.f32.gmra.mrb[0].mxu0 %v190
        %v283 = vpop.f32.mrb[0].mxu0
        %v284 = vadd.f32 %v173, %v283
        %v285 = vpop.f32.mrb[0].mxu0
        %v286 = vadd.f32 %v173, %v285
        %287 = vmatprep.mubr.f32.mxu0 0.0
        %288 = vmatmul.mubr.f32.gmra.mrb[0].mxu0 %v193
        %v289 = vpop.f32.mrb[0].mxu0
        %v290 = vadd.f32 %v178, %v289
        %v291 = vpop.f32.mrb[0].mxu0
        %v292 = vadd.f32 %v178, %v291
        %293 = vmatprep.mubr.f32.mxu0 0.0
        %294 = vmatmul.mubr.f32.gmra.mrb[0].mxu0 %v196
        %v295 = vpop.f32.mrb[0].mxu0
        %v296 = vadd.f32 %v183, %v295
        %v297 = vpop.f32.mrb[0].mxu0
        %v298 = vadd.f32 %v183, %v297
        %299 = vdwg.mxu0
        %300 = vmatprep.subr.mxu0 %v209
        %301 = vmatpush1.msra.mxu0 %v206
        %302 = vmatprep.subr.mxu0 0.0
        %303 = vmatpush1.msra.mxu0 0.0
        %304 = vmatprep.subr.mxu0 0.0
        %305 = vmatpush1.msra.mxu0 0.0
        %306 = vmatprep.subr.mxu0 0.0
        %307 = vmatpush1.msra.mxu0 0.0
        %308 = vmatprep.subr.mxu0 0.0
        %309 = vmatpush1.msra.mxu0 0.0
        %310 = vmatprep.subr.mxu0 0.0
        %311 = vmatpush1.msra.mxu0 0.0
        %312 = vmatprep.subr.mxu0 0.0
        %313 = vmatpush1.msra.mxu0 0.0
        %314 = vmatprep.subr.mxu0 0.0
        %315 = vmatpush1.msra.mxu0 0.0
        %316 = vmatprep.subr.mxu0 0.0
        %317 = vmatpush1.msra.mxu0 0.0
        %318 = vmatprep.subr.mxu0 0.0
        %319 = vmatpush1.msra.mxu0 0.0
        %320 = vmatprep.subr.mxu0 0.0
        %321 = vmatpush1.msra.mxu0 0.0
        %322 = vmatprep.subr.mxu0 0.0
        %323 = vmatpush1.msra.mxu0 0.0
        %324 = vmatprep.subr.mxu0 0.0
        %325 = vmatpush1.msra.mxu0 0.0
        %326 = vmatprep.subr.mxu0 0.0
        %327 = vmatpush1.msra.mxu0 0.0
        %328 = vmatprep.subr.mxu0 0.0
        %329 = vmatpush1.msra.mxu0 0.0
        %330 = vmatprep.subr.mxu0 0.0
        %331 = vmatpush1.msra.mxu0 0.0
        %332 = vmatprep.subr.mxu0 0.0
        %333 = vmatpush1.msra.mxu0 0.0
        %334 = vmatprep.subr.mxu0 0.0
        %335 = vmatpush1.msra.mxu0 0.0
        %336 = vmatprep.subr.mxu0 0.0
        %337 = vmatpush1.msra.mxu0 0.0
        %338 = vmatprep.subr.mxu0 0.0
        %339 = vmatpush1.msra.mxu0 0.0
        %340 = vmatprep.subr.mxu0 0.0
        %341 = vmatpush1.msra.mxu0 0.0
        %342 = vmatprep.subr.mxu0 0.0
        %343 = vmatpush1.msra.mxu0 0.0
        %344 = vmatprep.subr.mxu0 0.0
        %345 = vmatpush1.msra.mxu0 0.0
        %346 = vmatprep.subr.mxu0 0.0
        %347 = vmatpush1.msra.mxu0 0.0
        %348 = vmatprep.subr.mxu0 0.0
        %349 = vmatpush1.msra.mxu0 0.0
        %350 = vmatprep.subr.mxu0 0.0
        %351 = vmatpush1.msra.mxu0 0.0
        %352 = vmatprep.subr.mxu0 0.0
        %353 = vmatpush1.msra.mxu0 0.0
        %354 = vmatprep.subr.mxu0 0.0
        %355 = vmatpush1.msra.mxu0 0.0
        %356 = vmatprep.subr.mxu0 0.0
        %357 = vmatpush1.msra.mxu0 0.0
        %358 = vmatprep.subr.mxu0 0.0
        %359 = vmatpush1.msra.mxu0 0.0
        %360 = vmatprep.subr.mxu0 0.0
        %361 = vmatpush1.msra.mxu0 0.0
        %362 = vmatprep.subr.mxu0 0.0
        %363 = vmatpush1.msra.mxu0 0.0
        %364 = vmatprep.mubr.f32.mxu0 0.0
        %365 = vmatmul.mubr.f32.gmra.mrb[0].mxu0 %v187
        %v366 = vpop.f32.mrb[0].mxu0
        %v367 = vadd.f32 %v168, %v366
        %v368 = vpop.f32.mrb[0].mxu0
        %v369 = vadd.f32 %v168, %v368
        %370 = vmatprep.mubr.f32.mxu0 0.0
        %371 = vmatmul.mubr.f32.gmra.mrb[0].mxu0 %v190
        %v372 = vpop.f32.mrb[0].mxu0
        %v373 = vadd.f32 %v173, %v372
        %v374 = vpop.f32.mrb[0].mxu0
        %v375 = vadd.f32 %v173, %v374
        %376 = vmatprep.mubr.f32.mxu0 0.0
        %377 = vmatmul.mubr.f32.gmra.mrb[0].mxu0 %v193
        %v378 = vpop.f32.mrb[0].mxu0
        %v379 = vadd.f32 %v178, %v378
        %v380 = vpop.f32.mrb[0].mxu0
        %v381 = vadd.f32 %v178, %v380
        %382 = vmatprep.mubr.f32.mxu0 0.0
        %383 = vmatmul.mubr.f32.gmra.mrb[0].mxu0 %v196
        %v384 = vpop.f32.mrb[0].mxu0
        %v385 = vadd.f32 %v183, %v384
        %v386 = vpop.f32.mrb[0].mxu0
        %v387 = vadd.f32 %v183, %v386
        %388 = vdwg.mxu0
        %v389 = vmax.f32 %v278, 0.0
        %v390 = vmax.f32 %v280, 0.0
        %v391 = vmax.f32 %v367, 0.0
        %v392 = vmax.f32 %v369, 0.0
        %v393 = vmax.f32 %v284, 0.0
        %v394 = vmax.f32 %v286, 0.0
        %v395 = vmax.f32 %v373, 0.0
        %v396 = vmax.f32 %v375, 0.0
        %v397 = vmax.f32 %v290, 0.0
        %v398 = vmax.f32 %v292, 0.0
        %v399 = vmax.f32 %v379, 0.0
        %v400 = vmax.f32 %v381, 0.0
        %v401 = vmax.f32 %v296, 0.0
        %v402 = vmax.f32 %v298, 0.0
        %v403 = vmax.f32 %v385, 0.0
        %v404 = vmax.f32 %v387, 0.0
        %406 = vset.pattern.permute.xlu0 0
        %407 = vperm.xlu0 %406, %v159
        %v408 = vpop.permute.xlu0 %407
        %411 = vset.pattern.permute.xlu0 0
        %412 = vperm.xlu0 %411, %v160
        %v413 = vpop.permute.xlu0 %412
        %vm415 = vcmask 261120
        %v417 = vsel %vm415, %v157, 0
        %v420 = vsel %vm415, %v158, 0
        %422 = vmatprep.subr.mxu0 %v390
        %423 = vmatpush1.msra.mxu0 %v389
        %424 = vmatprep.subr.mxu0 %v394
        %425 = vmatpush1.msra.mxu0 %v393
        %426 = vmatprep.subr.mxu0 %v398
        %427 = vmatpush1.msra.mxu0 %v397
        %428 = vmatprep.subr.mxu0 %v402
        %429 = vmatpush1.msra.mxu0 %v401
        %430 = vmatprep.subr.mxu0 0.0
        %431 = vmatpush1.msra.mxu0 0.0
        %432 = vmatprep.subr.mxu0 0.0
        %433 = vmatpush1.msra.mxu0 0.0
        %434 = vmatprep.subr.mxu0 0.0
        %435 = vmatpush1.msra.mxu0 0.0
        %436 = vmatprep.subr.mxu0 0.0
        %437 = vmatpush1.msra.mxu0 0.0
        %438 = vmatprep.subr.mxu0 0.0
        %439 = vmatpush1.msra.mxu0 0.0
        %440 = vmatprep.subr.mxu0 0.0
        %441 = vmatpush1.msra.mxu0 0.0
        %442 = vmatprep.subr.mxu0 0.0
        %443 = vmatpush1.msra.mxu0 0.0
        %444 = vmatprep.subr.mxu0 0.0
        %445 = vmatpush1.msra.mxu0 0.0
        %446 = vmatprep.subr.mxu0 0.0
        %447 = vmatpush1.msra.mxu0 0.0
        %448 = vmatprep.subr.mxu0 0.0
        %449 = vmatpush1.msra.mxu0 0.0
        %450 = vmatprep.subr.mxu0 0.0
        %451 = vmatpush1.msra.mxu0 0.0
        %452 = vmatprep.subr.mxu0 0.0
        %453 = vmatpush1.msra.mxu0 0.0
        %454 = vmatprep.subr.mxu0 0.0
        %455 = vmatpush1.msra.mxu0 0.0
        %456 = vmatprep.subr.mxu0 0.0
        %457 = vmatpush1.msra.mxu0 0.0
        %458 = vmatprep.subr.mxu0 0.0
        %459 = vmatpush1.msra.mxu0 0.0
        %460 = vmatprep.subr.mxu0 0.0
        %461 = vmatpush1.msra.mxu0 0.0
        %462 = vmatprep.subr.mxu0 0.0
        %463 = vmatpush1.msra.mxu0 0.0
        %464 = vmatprep.subr.mxu0 0.0
        %465 = vmatpush1.msra.mxu0 0.0
        %466 = vmatprep.subr.mxu0 0.0
        %467 = vmatpush1.msra.mxu0 0.0
        %468 = vmatprep.subr.mxu0 0.0
        %469 = vmatpush1.msra.mxu0 0.0
        %470 = vmatprep.subr.mxu0 0.0
        %471 = vmatpush1.msra.mxu0 0.0
        %472 = vmatprep.subr.mxu0 0.0
        %473 = vmatpush1.msra.mxu0 0.0
        %474 = vmatprep.subr.mxu0 0.0
        %475 = vmatpush1.msra.mxu0 0.0
        %476 = vmatprep.subr.mxu0 0.0
        %477 = vmatpush1.msra.mxu0 0.0
        %478 = vmatprep.subr.mxu0 0.0
        %479 = vmatpush1.msra.mxu0 0.0
        %480 = vmatprep.subr.mxu0 0.0
        %481 = vmatpush1.msra.mxu0 0.0
        %482 = vmatprep.subr.mxu0 0.0
        %483 = vmatpush1.msra.mxu0 0.0
        %484 = vmatprep.subr.mxu0 0.0
        %485 = vmatpush1.msra.mxu0 0.0
        %486 = vmatprep.mubr.f32.mxu0 0.0
        %487 = vmatmul.mubr.f32.gmra.mrb[0].mxu0 %v417
        %v488 = vpop.f32.mrb[0].mxu0
        %v489 = vadd.f32 %v408, %v488
        %v490 = vpop.f32.mrb[0].mxu0
        %v491 = vadd.f32 %v408, %v490
        %492 = vmatprep.mubr.f32.mxu0 0.0
        %493 = vmatmul.mubr.f32.gmra.mrb[0].mxu0 %v420
        %v494 = vpop.f32.mrb[0].mxu0
        %v495 = vadd.f32 %v413, %v494
        %v496 = vpop.f32.mrb[0].mxu0
        %v497 = vadd.f32 %v413, %v496
        %498 = vdwg.mxu0
        %499 = vmatprep.subr.mxu0 %v392
        %500 = vmatpush1.msra.mxu0 %v391
        %501 = vmatprep.subr.mxu0 %v396
        %502 = vmatpush1.msra.mxu0 %v395
        %503 = vmatprep.subr.mxu0 %v400
        %504 = vmatpush1.msra.mxu0 %v399
        %505 = vmatprep.subr.mxu0 %v404
        %506 = vmatpush1.msra.mxu0 %v403
        %507 = vmatprep.subr.mxu0 0.0
        %508 = vmatpush1.msra.mxu0 0.0
        %509 = vmatprep.subr.mxu0 0.0
        %510 = vmatpush1.msra.mxu0 0.0
        %511 = vmatprep.subr.mxu0 0.0
        %512 = vmatpush1.msra.mxu0 0.0
        %513 = vmatprep.subr.mxu0 0.0
        %514 = vmatpush1.msra.mxu0 0.0
        %515 = vmatprep.subr.mxu0 0.0
        %516 = vmatpush1.msra.mxu0 0.0
        %517 = vmatprep.subr.mxu0 0.0
        %518 = vmatpush1.msra.mxu0 0.0
        %519 = vmatprep.subr.mxu0 0.0
        %520 = vmatpush1.msra.mxu0 0.0
        %521 = vmatprep.subr.mxu0 0.0
        %522 = vmatpush1.msra.mxu0 0.0
        %523 = vmatprep.subr.mxu0 0.0
        %524 = vmatpush1.msra.mxu0 0.0
        %525 = vmatprep.subr.mxu0 0.0
        %526 = vmatpush1.msra.mxu0 0.0
        %527 = vmatprep.subr.mxu0 0.0
        %528 = vmatpush1.msra.mxu0 0.0
        %529 = vmatprep.subr.mxu0 0.0
        %530 = vmatpush1.msra.mxu0 0.0
        %531 = vmatprep.subr.mxu0 0.0
        %532 = vmatpush1.msra.mxu0 0.0
        %533 = vmatprep.subr.mxu0 0.0
        %534 = vmatpush1.msra.mxu0 0.0
        %535 = vmatprep.subr.mxu0 0.0
        %536 = vmatpush1.msra.mxu0 0.0
        %537 = vmatprep.subr.mxu0 0.0
        %538 = vmatpush1.msra.mxu0 0.0
        %539 = vmatprep.subr.mxu0 0.0
        %540 = vmatpush1.msra.mxu0 0.0
        %541 = vmatprep.subr.mxu0 0.0
        %542 = vmatpush1.msra.mxu0 0.0
        %543 = vmatprep.subr.mxu0 0.0
        %544 = vmatpush1.msra.mxu0 0.0
        %545 = vmatprep.subr.mxu0 0.0
        %546 = vmatpush1.msra.mxu0 0.0
        %547 = vmatprep.subr.mxu0 0.0
        %548 = vmatpush1.msra.mxu0 0.0
        %549 = vmatprep.subr.mxu0 0.0
        %550 = vmatpush1.msra.mxu0 0.0
        %551 = vmatprep.subr.mxu0 0.0
        %552 = vmatpush1.msra.mxu0 0.0
        %553 = vmatprep.subr.mxu0 0.0
        %554 = vmatpush1.msra.mxu0 0.0
        %555 = vmatprep.subr.mxu0 0.0
        %556 = vmatpush1.msra.mxu0 0.0
        %557 = vmatprep.subr.mxu0 0.0
        %558 = vmatpush1.msra.mxu0 0.0
        %559 = vmatprep.subr.mxu0 0.0
        %560 = vmatpush1.msra.mxu0 0.0
        %561 = vmatprep.subr.mxu0 0.0
        %562 = vmatpush1.msra.mxu0 0.0
        %563 = vmatprep.mubr.f32.mxu0 0.0
        %564 = vmatmul.mubr.f32.gmra.mrb[0].mxu0 %v417
        %v565 = vpop.f32.mrb[0].mxu0
        %v566 = vadd.f32 %v408, %v565
        %v567 = vpop.f32.mrb[0].mxu0
        %v568 = vadd.f32 %v408, %v567
        %569 = vmatprep.mubr.f32.mxu0 0.0
        %570 = vmatmul.mubr.f32.gmra.mrb[0].mxu0 %v420
        %v571 = vpop.f32.mrb[0].mxu0
        %v572 = vadd.f32 %v413, %v571
        %v573 = vpop.f32.mrb[0].mxu0
        %v574 = vadd.f32 %v413, %v573
        %575 = vdwg.mxu0
        %v576 = vmax.f32 %v489, %v495
        %v577 = vrot.slane %v576, 4
        %v578 = vmax.f32 %v576, %v577
        %v579 = vrot.slane %v578, 2
        %v580 = vmax.f32 %v578, %v579
        %v581 = vrot.slane %v580, 1
        %v582 = vmax.f32 %v580, %v581
        %v583 = vmax.f32 %v491, %v497
        %v584 = vrot.slane %v583, 4
        %v585 = vmax.f32 %v583, %v584
        %v586 = vrot.slane %v585, 2
        %v587 = vmax.f32 %v585, %v586
        %v588 = vrot.slane %v587, 1
        %v589 = vmax.f32 %v587, %v588
        %v590 = vmax.f32 %v566, %v572
        %v591 = vrot.slane %v590, 4
        %v592 = vmax.f32 %v590, %v591
        %v593 = vrot.slane %v592, 2
        %v594 = vmax.f32 %v592, %v593
        %v595 = vrot.slane %v594, 1
        %v596 = vmax.f32 %v594, %v595
        %v597 = vmax.f32 %v568, %v574
        %v598 = vrot.slane %v597, 4
        %v599 = vmax.f32 %v597, %v598
        %v600 = vrot.slane %v599, 2
        %v601 = vmax.f32 %v599, %v600
        %v602 = vrot.slane %v601, 1
        %v603 = vmax.f32 %v601, %v602
        %v604 = vsub.f32 %v489, %v582
        %v605 = vsub.f32 %v491, %v589
        %v606 = vsub.f32 %v566, %v596
        %v607 = vsub.f32 %v568, %v603
        %v608 = vmul.f32 %v604, 1.442695
        %v609 = vpow.pop %v608
        %v610 = vmul.f32 %v605, 1.442695
        %v611 = vpow.pop %v610
        %v612 = vmul.f32 %v606, 1.442695
        %v613 = vpow.pop %v612
        %v614 = vmul.f32 %v607, 1.442695
        %v615 = vpow.pop %v614
        %vm616 = vcmask 31744
        %v618 = vsel %vm616, %v161, 0
        %v621 = vsel %vm616, %v162, 0
        %vm623 = vcmask 1043456
        %v625 = vsel %vm623, %v609, 0
        %v628 = vsel %vm623, %v611, 0
        %v631 = vsel %vm623, %v613, 0
        %v634 = vsel %vm623, %v615, 0
        %636 = vmatprep.subr.mxu0 %v628
        %637 = vmatpush1.msra.mxu0 %v625
        %638 = vmatprep.subr.mxu0 0.0
        %639 = vmatpush1.msra.mxu0 0.0
        %640 = vmatprep.subr.mxu0 0.0
        %641 = vmatpush1.msra.mxu0 0.0
        %642 = vmatprep.subr.mxu0 0.0
        %643 = vmatpush1.msra.mxu0 0.0
        %644 = vmatprep.subr.mxu0 0.0
        %645 = vmatpush1.msra.mxu0 0.0
        %646 = vmatprep.subr.mxu0 0.0
        %647 = vmatpush1.msra.mxu0 0.0
        %648 = vmatprep.subr.mxu0 0.0
        %649 = vmatpush1.msra.mxu0 0.0
        %650 = vmatprep.subr.mxu0 0.0
        %651 = vmatpush1.msra.mxu0 0.0
        %652 = vmatprep.subr.mxu0 0.0
        %653 = vmatpush1.msra.mxu0 0.0
        %654 = vmatprep.subr.mxu0 0.0
        %655 = vmatpush1.msra.mxu0 0.0
        %656 = vmatprep.subr.mxu0 0.0
        %657 = vmatpush1.msra.mxu0 0.0
        %658 = vmatprep.subr.mxu0 0.0
        %659 = vmatpush1.msra.mxu0 0.0
        %660 = vmatprep.subr.mxu0 0.0
        %661 = vmatpush1.msra.mxu0 0.0
        %662 = vmatprep.subr.mxu0 0.0
        %663 = vmatpush1.msra.mxu0 0.0
        %664 = vmatprep.subr.mxu0 0.0
        %665 = vmatpush1.msra.mxu0 0.0
        %666 = vmatprep.subr.mxu0 0.0
        %667 = vmatpush1.msra.mxu0 0.0
        %668 = vmatprep.subr.mxu0 0.0
        %669 = vmatpush1.msra.mxu0 0.0
        %670 = vmatprep.subr.mxu0 0.0
        %671 = vmatpush1.msra.mxu0 0.0
        %672 = vmatprep.subr.mxu0 0.0
        %673 = vmatpush1.msra.mxu0 0.0
        %674 = vmatprep.subr.mxu0 0.0
        %675 = vmatpush1.msra.mxu0 0.0
        %676 = vmatprep.subr.mxu0 0.0
        %677 = vmatpush1.msra.mxu0 0.0
        %678 = vmatprep.subr.mxu0 0.0
        %679 = vmatpush1.msra.mxu0 0.0
        %680 = vmatprep.subr.mxu0 0.0
        %681 = vmatpush1.msra.mxu0 0.0
        %682 = vmatprep.subr.mxu0 0.0
        %683 = vmatpush1.msra.mxu0 0.0
        %684 = vmatprep.subr.mxu0 0.0
        %685 = vmatpush1.msra.mxu0 0.0
        %686 = vmatprep.subr.mxu0 0.0
        %687 = vmatpush1.msra.mxu0 0.0
        %688 = vmatprep.subr.mxu0 0.0
        %689 = vmatpush1.msra.mxu0 0.0
        %690 = vmatprep.subr.mxu0 0.0
        %691 = vmatpush1.msra.mxu0 0.0
        %692 = vmatprep.subr.mxu0 0.0
        %693 = vmatpush1.msra.mxu0 0.0
        %694 = vmatprep.subr.mxu0 0.0
        %695 = vmatpush1.msra.mxu0 0.0
        %696 = vmatprep.subr.mxu0 0.0
        %697 = vmatpush1.msra.mxu0 0.0
        %698 = vmatprep.subr.mxu0 0.0
        %699 = vmatpush1.msra.mxu0 0.0
        %700 = vmatprep.mubr.f32.mxu0 0.0
        %701 = vmatmul.mubr.f32.gmra.mrb[0].mxu0 %v618
        %v702 = vpop.f32.mrb[0].mxu0
        %v703 = vadd.f32 0.0, %v702
        %v704 = vpop.f32.mrb[0].mxu0
        %v705 = vadd.f32 0.0, %v704
        %706 = vmatprep.mubr.f32.mxu0 0.0
        %707 = vmatmul.mubr.f32.gmra.mrb[0].mxu0 %v621
        %v708 = vpop.f32.mrb[0].mxu0
        %v709 = vadd.f32 0.0, %v708
        %v710 = vpop.f32.mrb[0].mxu0
        %v711 = vadd.f32 0.0, %v710
        %712 = vdwg.mxu0
        %713 = vmatprep.subr.mxu0 %v634
        %714 = vmatpush1.msra.mxu0 %v631
        %715 = vmatprep.subr.mxu0 0.0
        %716 = vmatpush1.msra.mxu0 0.0
        %717 = vmatprep.subr.mxu0 0.0
        %718 = vmatpush1.msra.mxu0 0.0
        %719 = vmatprep.subr.mxu0 0.0
        %720 = vmatpush1.msra.mxu0 0.0
        %721 = vmatprep.subr.mxu0 0.0
        %722 = vmatpush1.msra.mxu0 0.0
        %723 = vmatprep.subr.mxu0 0.0
        %724 = vmatpush1.msra.mxu0 0.0
        %725 = vmatprep.subr.mxu0 0.0
        %726 = vmatpush1.msra.mxu0 0.0
        %727 = vmatprep.subr.mxu0 0.0
        %728 = vmatpush1.msra.mxu0 0.0
        %729 = vmatprep.subr.mxu0 0.0
        %730 = vmatpush1.msra.mxu0 0.0
        %731 = vmatprep.subr.mxu0 0.0
        %732 = vmatpush1.msra.mxu0 0.0
        %733 = vmatprep.subr.mxu0 0.0
        %734 = vmatpush1.msra.mxu0 0.0
        %735 = vmatprep.subr.mxu0 0.0
        %736 = vmatpush1.msra.mxu0 0.0
        %737 = vmatprep.subr.mxu0 0.0
        %738 = vmatpush1.msra.mxu0 0.0
        %739 = vmatprep.subr.mxu0 0.0
        %740 = vmatpush1.msra.mxu0 0.0
        %741 = vmatprep.subr.mxu0 0.0
        %742 = vmatpush1.msra.mxu0 0.0
        %743 = vmatprep.subr.mxu0 0.0
        %744 = vmatpush1.msra.mxu0 0.0
        %745 = vmatprep.subr.mxu0 0.0
        %746 = vmatpush1.msra.mxu0 0.0
        %747 = vmatprep.subr.mxu0 0.0
        %748 = vmatpush1.msra.mxu0 0.0
        %749 = vmatprep.subr.mxu0 0.0
        %750 = vmatpush1.msra.mxu0 0.0
        %751 = vmatprep.subr.mxu0 0.0
        %752 = vmatpush1.msra.mxu0 0.0
        %753 = vmatprep.subr.mxu0 0.0
        %754 = vmatpush1.msra.mxu0 0.0
        %755 = vmatprep.subr.mxu0 0.0
        %756 = vmatpush1.msra.mxu0 0.0
        %757 = vmatprep.subr.mxu0 0.0
        %758 = vmatpush1.msra.mxu0 0.0
        %759 = vmatprep.subr.mxu0 0.0
        %760 = vmatpush1.msra.mxu0 0.0
        %761 = vmatprep.subr.mxu0 0.0
        %762 = vmatpush1.msra.mxu0 0.0
        %763 = vmatprep.subr.mxu0 0.0
        %764 = vmatpush1.msra.mxu0 0.0
        %765 = vmatprep.subr.mxu0 0.0
        %766 = vmatpush1.msra.mxu0 0.0
        %767 = vmatprep.subr.mxu0 0.0
        %768 = vmatpush1.msra.mxu0 0.0
        %769 = vmatprep.subr.mxu0 0.0
        %770 = vmatpush1.msra.mxu0 0.0
        %771 = vmatprep.subr.mxu0 0.0
        %772 = vmatpush1.msra.mxu0 0.0
        %773 = vmatprep.subr.mxu0 0.0
        %774 = vmatpush1.msra.mxu0 0.0
        %775 = vmatprep.subr.mxu0 0.0
        %776 = vmatpush1.msra.mxu0 0.0
        %777 = vmatprep.mubr.f32.mxu0 0.0
        %778 = vmatmul.mubr.f32.gmra.mrb[0].mxu0 %v618
        %v779 = vpop.f32.mrb[0].mxu0
        %v780 = vadd.f32 0.0, %v779
        %v781 = vpop.f32.mrb[0].mxu0
        %v782 = vadd.f32 0.0, %v781
        %783 = vmatprep.mubr.f32.mxu0 0.0
        %784 = vmatmul.mubr.f32.gmra.mrb[0].mxu0 %v621
        %v785 = vpop.f32.mrb[0].mxu0
        %v786 = vadd.f32 0.0, %v785
        %v787 = vpop.f32.mrb[0].mxu0
        %v788 = vadd.f32 0.0, %v787
        %789 = vdwg.mxu0
        %791 = vset.pattern.permute.xlu0 0
        %792 = vperm.xlu0 %791, %v163
        %v793 = vpop.permute.xlu0 %792
        %796 = vset.pattern.permute.xlu0 0
        %797 = vperm.xlu0 %796, %v164
        %v798 = vpop.permute.xlu0 %797
        %v800 = vadd.f32 %v793, %v489
        %v801 = vadd.f32 %v793, %v491
        %v802 = vadd.f32 %v793, %v566
        %v803 = vadd.f32 %v793, %v568
        %v804 = vadd.f32 %v798, %v495
        %v805 = vadd.f32 %v798, %v497
        %v806 = vadd.f32 %v798, %v572
        %v807 = vadd.f32 %v798, %v574
        %v808 = vsub.f32 %v800, %v582
        %v809 = vsub.f32 %v801, %v589
        %v810 = vsub.f32 %v802, %v596
        %v811 = vsub.f32 %v803, %v603
        %v812 = vsub.f32 %v804, %v582
        %v813 = vsub.f32 %v805, %v589
        %v814 = vsub.f32 %v806, %v596
        %v815 = vsub.f32 %v807, %v603
        %v816 = vlog2.pop %v703
        %v817 = vmul.f32 %v816, 0.6931472
        %v818 = vlog2.pop %v705
        %v819 = vmul.f32 %v818, 0.6931472
        %v820 = vlog2.pop %v780
        %v821 = vmul.f32 %v820, 0.6931472
        %v822 = vlog2.pop %v782
        %v823 = vmul.f32 %v822, 0.6931472
        %v824 = vlog2.pop %v709
        %v825 = vmul.f32 %v824, 0.6931472
        %v826 = vlog2.pop %v711
        %v827 = vmul.f32 %v826, 0.6931472
        %v828 = vlog2.pop %v786
        %v829 = vmul.f32 %v828, 0.6931472
        %v830 = vlog2.pop %v788
        %v831 = vmul.f32 %v830, 0.6931472
        %v832 = vsub.f32 %v808, %v817
        %v833 = vsub.f32 %v809, %v819
        %v834 = vsub.f32 %v810, %v821
        %v835 = vsub.f32 %v811, %v823
        %v836 = vsub.f32 %v812, %v825
        %v837 = vsub.f32 %v813, %v827
        %v838 = vsub.f32 %v814, %v829
        %v839 = vsub.f32 %v815, %v831
        %840 = vst [vmem:[%s137] sm:$0xff] %v832
        %841 = vst [vmem:[%s137 + $0x8] sm:$0xff] %v833
        %842 = vst [vmem:[%s137 + $0x10] sm:$0xff] %v834
        %843 = vst [vmem:[%s137 + $0x18] sm:$0xff] %v835
        %844 = vst [vmem:[%s137 + $0x20] sm:$0xff] %v836
        %845 = vst [vmem:[%s137 + $0x28] sm:$0xff] %v837
        %846 = vst [vmem:[%s137 + $0x30] sm:$0xff] %v838
        %847 = vst [vmem:[%s137 + $0x38] sm:$0xff] %v839
        %s848 = sand.u32 %s71, 1
        %s849 = scalar_lea.sflag [#allocation3], %s848
        %s850 = sand.u32 %s71, 1
        %s851 = smul.addr %s850, 64
        %s852 = scalar_lea.vmem [#allocation2], %s851
        // Predicated region
        $region29: #{tpu_custom_call.1} parent=27 // pred_check
          %p853 = pneg %p81
        $region30: #{tpu_custom_call.1} parent=27 // pred_check_branch
          %855 = sbr.rel (%p853) target = $region32
        $region31: #{tpu_custom_call.1} parent=27 // pred_region
          %s856 = smul.u32 4, %s16
          %s858 = ssub.s32 1024, 1024
          %859 = vsyncadd %s849, %s858
          %s860 = smul.addr %s856, 128
          %s861 = scalar_lea.hbm %s2, %s860
          %s862 = sshll.u32 %s852, 4
          %s863 = int_to_ptr.vmem [resolvable:$true] %s862
          %868 = dma.vmem_to_hbm [thread:$0]  %s863, 1024, %s861, %s849, 512, 1024, 32
        $region32: #{tpu_custom_call.1} parent=27 // pred_fallthru
          _
      $region28: #{tpu_custom_call.1} parent=5 // pred_fallthru
        _
      %p869 = scmp.le.s32.totalorder 2, %s11
      // Predicated region
      $region33: #{tpu_custom_call.1} parent=5 // pred_check
        %p870 = pneg %p869
      $region34: #{tpu_custom_call.1} parent=5 // pred_check_branch
        %872 = sbr.rel (%p870) target = $region36
      $region35: #{tpu_custom_call.1} parent=5 // pred_region
        %s873 = ssub.s32 %s11, 2
        // Predicated region
        $region37: #{tpu_custom_call.1} parent=35 // pred_check
          %p874 = pneg %p87
        $region38: #{tpu_custom_call.1} parent=35 // pred_check_branch
          %876 = sbr.rel (%p874) target = $region40
        $region39: #{tpu_custom_call.1} parent=35 // pred_region
          %s877 = sand.u32 %s72, 1
          %s878 = scalar_lea.sflag [#allocation3], %s877
          %s879 = sand.u32 %s72, 1
          %s880 = smul.addr %s879, 64
          %s881 = scalar_lea.vmem [#allocation2], %s880
          %882 = dma.done %s878, 1024
        $region40: #{tpu_custom_call.1} parent=35 // pred_fallthru
          _
      $region36: #{tpu_custom_call.1} parent=5 // pred_fallthru
        _
    $region6: #{tpu_custom_call.1} parent=1 // loop_footer
      %s15 = sadd.s32 1, %s11
    $region7: #{tpu_custom_call.1} parent=1 // loop_footer_branch
      %10 = sbr.rel target = $region3
    $region8: #{tpu_custom_call.1} parent=1 // loop_exit
      _
    %883 = vsyncpa [#allocation3], 1
    %s884 = scalar_lea.sflag [#allocation3], 1
    %885 = vsyncpa %s884, 1

</llo_original>
